<compile_context>
chip_gen: v7x
topology: tpu7x:2x2x1
jax: 0.10.0
libtpu: 0.0.40
codegen_flags: <defaults>
</compile_context>

<pallas_src>
import functools
import math

import jax
import jax.numpy as jnp
from jax.experimental import pallas as pl
from jax.experimental.pallas import tpu as pltpu

_LANE = 128
_SUBLANE = 8

# Conservative thresholds — safe under default scoped-VMEM limits on
# v5e / v6e / v7x (double-buffered output blocks included).
_TABLE_VMEM_BUDGET_BYTES = 8 * 1024 * 1024   # table-resident path budget
_MAX_ONEHOT_VOCAB = 4096                     # one-hot matmul only for small vocab
_MAX_TOKENS_PER_HBM_CALL = 4096              # bounds scalar-prefetch SMEM usage


def _round_up(x, n):
    return ((x + n - 1) // n) * n


# ---------------------------------------------------------------------------
# Path A: table-resident VMEM gather via one-hot matmul on the MXU.
# ---------------------------------------------------------------------------
def _onehot_kernel(ids_ref, table_ref, o_ref, *, scale):
    # ids_ref   : (tile_m, 1) int32 VMEM block of token ids
    # table_ref : (vocab_pad, dim) full table, VMEM resident
    # o_ref     : (tile_m, dim) output tile
    ids = ids_ref[...]                                    # (tile_m, 1)
    tile_m = ids.shape[0]
    vocab_pad = table_ref.shape[0]
    iota = jax.lax.broadcasted_iota(jnp.int32, (tile_m, vocab_pad), 1)
    onehot = (iota == ids).astype(table_ref.dtype)        # exact 0/1 rows
    gathered = jnp.dot(onehot, table_ref[...],
                       preferred_element_type=jnp.float32)
    o_ref[...] = (gathered * scale).astype(o_ref.dtype)


def _call_resident(ids, table, tile_m, scale):
    m_pad = ids.shape[0]
    vocab, dim = table.shape
    vocab_pad = _round_up(vocab, _LANE)
    if vocab_pad != vocab:
        # Zero rows are never selected (ids are clamped to [0, vocab)).
        table = jnp.pad(table, ((0, vocab_pad - vocab), (0, 0)))
    grid = (m_pad // tile_m,)
    kernel = functools.partial(_onehot_kernel, scale=scale)
    return pl.pallas_call(
        kernel,
        out_shape=jax.ShapeDtypeStruct((m_pad, dim), table.dtype),
        grid_spec=pltpu.PrefetchScalarGridSpec(
            num_scalar_prefetch=0,
            grid=grid,
            in_specs=[
                pl.BlockSpec((tile_m, 1), lambda i: (i, 0)),        # ids
                pl.BlockSpec((vocab_pad, dim), lambda i: (0, 0)),   # table (loaded once)
            ],
            out_specs=pl.BlockSpec((tile_m, dim), lambda i: (i, 0)),
        ),
        compiler_params=pltpu.CompilerParams(
            dimension_semantics=("parallel",)),
    )(ids.reshape(m_pad, 1), table)


# ---------------------------------------------------------------------------
# Path B: HBM row gather with double-buffered DMA prefetch across tiles.
# ---------------------------------------------------------------------------
def _gather_kernel(ids_ref, table_ref, o_ref, rows_vmem, copy_sem, *,
                   tile_m, scale):
    # ids_ref   : (m_chunk,) int32 in SMEM (scalar prefetch; already clamped)
    # table_ref : (vocab, dim) raw HBM ref (memory_space=pl.ANY)
    # o_ref     : (tile_m, dim) output tile in VMEM
    # rows_vmem : (2, tile_m, dim) double-buffered gather scratch
    # copy_sem  : (2,) DMA semaphores (one per slot)
    i = pl.program_id(0)
    n = pl.num_programs(0)
    slot = i % 2

    def issue_tile(tile_idx, slot_idx):
        base = tile_idx * tile_m

        def _start(j, carry):
            row = ids_ref[base + j]
            pltpu.make_async_copy(
                table_ref.at[pl.ds(row, 1), :],
                rows_vmem.at[slot_idx, pl.ds(j, 1), :],
                copy_sem.at[slot_idx],
            ).start()
            return carry

        # Unrolled issue loop keeps the descriptor (misc-slot) rate fed.
        jax.lax.fori_loop(0, tile_m, _start, 0, unroll=8)

    # Prime the pipeline on the first grid step.
    @pl.when(i == 0)
    def _():
        issue_tile(0, 0)

    # Issue the NEXT tile's gather before waiting on this one (lookahead).
    @pl.when(i + 1 < n)
    def _():
        issue_tile(i + 1, 1 - slot)

    # Single tile-sized wait retires all tile_m row copies of this slot:
    # the DMA semaphore counts bytes and the totals match exactly.
    pltpu.make_async_copy(rows_vmem.at[slot], rows_vmem.at[slot],
                          copy_sem.at[slot]).wait()

    # Scale in the table dtype (no f32 round-trip) and store lane-dense.
    o_ref[...] = (rows_vmem[slot] * scale).astype(o_ref.dtype)


def _call_hbm_gather(ids, table, tile_m, scale):
    m_pad = ids.shape[0]
    _, dim = table.shape
    grid = (m_pad // tile_m,)
    kernel = functools.partial(_gather_kernel, tile_m=tile_m, scale=scale)
    return pl.pallas_call(
        kernel,
        out_shape=jax.ShapeDtypeStruct((m_pad, dim), table.dtype),
        grid_spec=pltpu.PrefetchScalarGridSpec(
            num_scalar_prefetch=1,                        # ids -> SMEM
            grid=grid,
            in_specs=[pl.BlockSpec(memory_space=pl.ANY)],  # table stays in HBM
            out_specs=pl.BlockSpec((tile_m, dim), lambda i, ids_ref: (i, 0)),
            scratch_shapes=[
                pltpu.VMEM((2, tile_m, dim), table.dtype),  # double buffer
                pltpu.SemaphoreType.DMA((2,)),              # per-slot sems
            ],
        ),
        # Cross-iteration prefetch needs a sequential grid.
        compiler_params=pltpu.CompilerParams(
            dimension_semantics=("arbitrary",)),
    )(ids, table)


# ---------------------------------------------------------------------------
# Public wrapper.
# ---------------------------------------------------------------------------
@functools.partial(jax.jit, static_argnames=("tile_m", "force_hbm_gather"))
def embeddings_forward(token_ids, table, *, tile_m=256, force_hbm_gather=False):
    """token_ids (...,) int -> embeddings (..., dim_model) * sqrt(dim_model)."""
    vocab, dim_model = table.shape
    scale = float(math.sqrt(dim_model))

    lead_shape = token_ids.shape
    ids = token_ids.reshape(-1).astype(jnp.int32)
    # nn.Embedding requires ids in [0, vocab); clamp so no OOB HBM DMA occurs.
    # TODO(synk): PyTorch raises on out-of-range ids; we clamp instead.
    ids = jnp.clip(ids, 0, vocab - 1)
    m = ids.shape[0]

    # Shrink the tile for short sequences, keep it sublane-aligned.
    tile_m = max(_SUBLANE, min(tile_m, _round_up(m, _SUBLANE)))
    tile_m = _round_up(tile_m, _SUBLANE)
    m_pad = _round_up(m, tile_m)
    if m_pad != m:
        ids = jnp.pad(ids, (0, m_pad - m))      # padded ids are valid (0) rows

    table_bytes = vocab * dim_model * jnp.dtype(table.dtype).itemsize
    use_resident = (not force_hbm_gather
                    and table_bytes <= _TABLE_VMEM_BUDGET_BYTES
                    and vocab <= _MAX_ONEHOT_VOCAB)

    if use_resident:
        out = _call_resident(ids, table, tile_m, scale)
    else:
        # Chunk over tokens so the scalar-prefetched ids never blow SMEM.
        chunk = tile_m * max(1, _MAX_TOKENS_PER_HBM_CALL // tile_m)
        pieces = []
        for start in range(0, m_pad, chunk):
            stop = min(start + chunk, m_pad)
            pieces.append(_call_hbm_gather(ids[start:stop], table, tile_m, scale))
        out = pieces[0] if len(pieces) == 1 else jnp.concatenate(pieces, axis=0)

    return out[:m].reshape(*lead_shape, dim_model)


if __name__ == "__main__":
    batch, seq, dim_model, vocab = 2, 8, 128, 50

    key = jax.random.PRNGKey(0)
    k_ids, k_tab = jax.random.split(key)
    token_ids = jax.random.randint(k_ids, (batch, seq), 0, vocab, dtype=jnp.int32)
    # nn.Embedding default init is N(0, 1).
    table = jax.random.normal(k_tab, (vocab, dim_model), jnp.float32)

    # Pure-JAX reference (same math as the PyTorch module).
    ref = jnp.take(table, token_ids, axis=0) * math.sqrt(dim_model)

    # Path A: table-resident VMEM gather (one-hot MXU matmul).
    out_a = jax.block_until_ready(embeddings_forward(token_ids, table))
    assert out_a.shape == (batch, seq, dim_model)
    assert jnp.allclose(out_a, ref, atol=1e-5, rtol=1e-5), "resident path mismatch"

    # Path B: HBM row gather with double-buffered DMA prefetch (forced).
    out_b = jax.block_until_ready(
        embeddings_forward(token_ids, table, force_hbm_gather=True))
    assert jnp.allclose(out_b, ref, atol=1e-5, rtol=1e-5), "HBM path mismatch"

    # Path B with multiple tiles to exercise the cross-tile double buffering.
    token_ids2 = jax.random.randint(k_ids, (4, 96), 0, vocab, dtype=jnp.int32)
    ref2 = jnp.take(table, token_ids2, axis=0) * math.sqrt(dim_model)
    out_b2 = jax.block_until_ready(
        embeddings_forward(token_ids2, table, tile_m=128, force_hbm_gather=True))
    assert jnp.allclose(out_b2, ref2, atol=1e-5, rtol=1e-5), "multi-tile mismatch"

    print("KERNEL_OK")
</pallas_src>

<mosaic_0001>
module attributes {stable_mosaic.version = 11 : i64} {
  func.func @_onehot_kernel(%arg0: i32, %arg1: memref<16x1xi32, #tpu.memory_space<vmem>>, %arg2: memref<128x128xf32, #tpu.memory_space<vmem>>, %arg3: memref<16x128xf32, #tpu.memory_space<vmem>>) attributes {dimension_semantics = [#tpu.dimension_semantics<parallel>], iteration_bounds = array<i64: 1>, scalar_prefetch = 0 : i64, scratch_operands = 0 : i64, tpu.core_type = #tpu.core_type<tc>, window_params = [{transform_indices = @transform_0, window_bounds = array<i64: 16, 1>}, {pipeline_mode = #tpu.pipeline_mode<synchronous>, transform_indices = @transform_1, window_bounds = array<i64: 128, 128>}, {transform_indices = @transform_2, window_bounds = array<i64: 16, 128>}]} {
    %c0 = arith.constant 0 : index
    %c0_0 = arith.constant 0 : index
    %0 = vector.load %arg1[%c0, %c0_0] : memref<16x1xi32, #tpu.memory_space<vmem>>, vector<16x1xi32>
    %1 = tpu.iota {dimensions = array<i32: 1>} : vector<16x128xi32>
    %2 = vector.broadcast %0 : vector<16x1xi32> to vector<16x128xi32>
    %3 = arith.cmpi eq, %1, %2 : vector<16x128xi32>
    %4 = arith.extui %3 : vector<16x128xi1> to vector<16x128xi32>
    %5 = arith.sitofp %4 : vector<16x128xi32> to vector<16x128xf32>
    %c0_1 = arith.constant 0 : index
    %c0_2 = arith.constant 0 : index
    %6 = vector.load %arg2[%c0_1, %c0_2] : memref<128x128xf32, #tpu.memory_space<vmem>>, vector<128x128xf32>
    %cst = arith.constant dense<0.000000e+00> : vector<16x128xf32>
    %7 = tpu.matmul %5, %6, %cst {dimension_numbers = #tpu.dot_dimension_numbers<[1], [0], [0], [1], [0, 0, 1, 1], [], []>} : vector<16x128xf32>, vector<128x128xf32>, vector<16x128xf32> -> vector<16x128xf32>
    %cst_3 = arith.constant 11.3137083 : f32
    %8 = vector.broadcast %cst_3 : f32 to vector<16x128xf32>
    %9 = arith.mulf %7, %8 : vector<16x128xf32>
    %c0_4 = arith.constant 0 : index
    %c0_5 = arith.constant 0 : index
    %10 = vector.load %arg3[%c0_4, %c0_5] : memref<16x128xf32, #tpu.memory_space<vmem>>, vector<16x128xf32>
    tpu.vector_store %arg3[%c0_4, %c0_5], %9 {strides = array<i32>} : memref<16x128xf32, #tpu.memory_space<vmem>>, vector<16x128xf32>,
    return
  }
  func.func @transform_0(%arg0: i32) -> (i32, i32) {
    %c0_i32 = arith.constant 0 : i32
    %c0_i32_0 = arith.constant 0 : i32
    return %arg0, %c0_i32 : i32, i32
  }
  func.func @transform_1(%arg0: i32) -> (i32, i32) {
    %c0_i32 = arith.constant 0 : i32
    %c0_i32_0 = arith.constant 0 : i32
    %c0_i32_1 = arith.constant 0 : i32
    return %c0_i32, %c0_i32_0 : i32, i32
  }
  func.func @transform_2(%arg0: i32) -> (i32, i32) {
    %c0_i32 = arith.constant 0 : i32
    %c0_i32_0 = arith.constant 0 : i32
    return %arg0, %c0_i32 : i32, i32
  }
}

</mosaic_0001>

<llo_original>
// kernel: embeddings_forward.1
$region0: #{embeddings_forward.1}
  #allocation0 [shape = 'u32[]', space=smem, size = 0x4, offset = 0x4, fixed_abs, tag = 'smem constant byte address 0x4 - core index']
  #allocation1 [shape = 'u32[144,128]{1,0:T(1,128)}', space=vmem, size = 0x12000, scoped, tag = 'internal scratch']
  %s0 = inlined_call_operand.vmem [shape: s32[16,1], index: 0, kind: input, shape index: {}]
  %s1 = inlined_call_operand.vmem [shape: f32[128,128], index: 1, kind: input, shape index: {}]
  %s2 = inlined_call_operand.hbm [shape: f32[16,128], index: 2, kind: output, shape index: {}]
  %s3 = sld [smem:[#allocation0]]
  $region18: #{embeddings_forward.1} parent=0
    _
  %s5 = ssub.s32 1, %s3
  %s6 = scalar_select 0, %s5, %s3
  $region1: #{embeddings_forward.1} parent=0
    #allocation2 [shape = 'u8[8192]{0}', space=vmem, size = 0x2000, scoped, tag = 'output window, operand 0, single buffered']
    #allocation3 [shape = 's32[1]{0}', space=sflag, size = 0x4, scoped, tag = 'scoped memory for embeddings_forward.1']
    %7 = vsyncpa [#allocation3], 0
    // Predicated region
    $region2: #{embeddings_forward.1} parent=1 // pred_check
      _
    $region3: #{embeddings_forward.1} parent=1 // pred_check_branch
      %9 = sbr.rel (0) target = $region5
    $region4: #{embeddings_forward.1} parent=1 // pred_region
      _
    $region5: #{embeddings_forward.1} parent=1 // pred_fallthru
      _
    // Predicated region
    $region6: #{embeddings_forward.1} parent=1 // pred_check
      _
    $region7: #{embeddings_forward.1} parent=1 // pred_check_branch
      %11 = sbr.rel (0) target = $region9
    $region8: #{embeddings_forward.1} parent=1 // pred_region
      _
    $region9: #{embeddings_forward.1} parent=1 // pred_fallthru
      _
    %v12 = vld [vmem:[%s0] sm:$0xff]
    %v13 = vld [vmem:[%s0 + $0x8] sm:$0xff]
    %v14 = vlaneseq
    %v15 = vand.u32 %v14, 127
    %16 = vset.pattern.permute.xlu0 0
    %17 = vperm.xlu0 %16, %v12
    %v18 = vpop.permute.xlu0 %17
    %19 = vset.pattern.permute.xlu0 0
    %20 = vperm.xlu0 %19, %v13
    %v21 = vpop.permute.xlu0 %20
    %vm22 = vcmp.eq.s32.totalorder %v15, %v18
    %vm23 = vcmp.eq.s32.totalorder %v15, %v21
    %v24 = vsel %vm22, 1, 0
    %v25 = vsel %vm23, 1, 0
    %v26 = vcvt.s32.f32 %v24
    %v27 = vcvt.s32.f32 %v25
    %v28 = vld [vmem:[%s1] sm:$0xff]
    %v29 = vld [vmem:[%s1 + $0x8] sm:$0xff]
    %v30 = vld [vmem:[%s1 + $0x10] sm:$0xff]
    %v31 = vld [vmem:[%s1 + $0x18] sm:$0xff]
    %v32 = vld [vmem:[%s1 + $0x20] sm:$0xff]
    %v33 = vld [vmem:[%s1 + $0x28] sm:$0xff]
    %v34 = vld [vmem:[%s1 + $0x30] sm:$0xff]
    %v35 = vld [vmem:[%s1 + $0x38] sm:$0xff]
    %v36 = vld [vmem:[%s1 + $0x40] sm:$0xff]
    %v37 = vld [vmem:[%s1 + $0x48] sm:$0xff]
    %v38 = vld [vmem:[%s1 + $0x50] sm:$0xff]
    %v39 = vld [vmem:[%s1 + $0x58] sm:$0xff]
    %v40 = vld [vmem:[%s1 + $0x60] sm:$0xff]
    %v41 = vld [vmem:[%s1 + $0x68] sm:$0xff]
    %v42 = vld [vmem:[%s1 + $0x70] sm:$0xff]
    %v43 = vld [vmem:[%s1 + $0x78] sm:$0xff]
    %44 = vmatprep.subr.mxu0 0.0
    %45 = vmatpush1.msra.mxu0 %v28
    %46 = vmatprep.subr.mxu0 0.0
    %47 = vmatpush1.msra.mxu0 %v29
    %48 = vmatprep.subr.mxu0 0.0
    %49 = vmatpush1.msra.mxu0 %v30
    %50 = vmatprep.subr.mxu0 0.0
    %51 = vmatpush1.msra.mxu0 %v31
    %52 = vmatprep.subr.mxu0 0.0
    %53 = vmatpush1.msra.mxu0 %v32
    %54 = vmatprep.subr.mxu0 0.0
    %55 = vmatpush1.msra.mxu0 %v33
    %56 = vmatprep.subr.mxu0 0.0
    %57 = vmatpush1.msra.mxu0 %v34
    %58 = vmatprep.subr.mxu0 0.0
    %59 = vmatpush1.msra.mxu0 %v35
    %60 = vmatprep.subr.mxu0 0.0
    %61 = vmatpush1.msra.mxu0 %v36
    %62 = vmatprep.subr.mxu0 0.0
    %63 = vmatpush1.msra.mxu0 %v37
    %64 = vmatprep.subr.mxu0 0.0
    %65 = vmatpush1.msra.mxu0 %v38
    %66 = vmatprep.subr.mxu0 0.0
    %67 = vmatpush1.msra.mxu0 %v39
    %68 = vmatprep.subr.mxu0 0.0
    %69 = vmatpush1.msra.mxu0 %v40
    %70 = vmatprep.subr.mxu0 0.0
    %71 = vmatpush1.msra.mxu0 %v41
    %72 = vmatprep.subr.mxu0 0.0
    %73 = vmatpush1.msra.mxu0 %v42
    %74 = vmatprep.subr.mxu0 0.0
    %75 = vmatpush1.msra.mxu0 %v43
    %76 = vmatprep.subr.mxu0 0.0
    %77 = vmatpush1.msra.mxu0 0.0
    %78 = vmatprep.subr.mxu0 0.0
    %79 = vmatpush1.msra.mxu0 0.0
    %80 = vmatprep.subr.mxu0 0.0
    %81 = vmatpush1.msra.mxu0 0.0
    %82 = vmatprep.subr.mxu0 0.0
    %83 = vmatpush1.msra.mxu0 0.0
    %84 = vmatprep.subr.mxu0 0.0
    %85 = vmatpush1.msra.mxu0 0.0
    %86 = vmatprep.subr.mxu0 0.0
    %87 = vmatpush1.msra.mxu0 0.0
    %88 = vmatprep.subr.mxu0 0.0
    %89 = vmatpush1.msra.mxu0 0.0
    %90 = vmatprep.subr.mxu0 0.0
    %91 = vmatpush1.msra.mxu0 0.0
    %92 = vmatprep.subr.mxu0 0.0
    %93 = vmatpush1.msra.mxu0 0.0
    %94 = vmatprep.subr.mxu0 0.0
    %95 = vmatpush1.msra.mxu0 0.0
    %96 = vmatprep.subr.mxu0 0.0
    %97 = vmatpush1.msra.mxu0 0.0
    %98 = vmatprep.subr.mxu0 0.0
    %99 = vmatpush1.msra.mxu0 0.0
    %100 = vmatprep.subr.mxu0 0.0
    %101 = vmatpush1.msra.mxu0 0.0
    %102 = vmatprep.subr.mxu0 0.0
    %103 = vmatpush1.msra.mxu0 0.0
    %104 = vmatprep.subr.mxu0 0.0
    %105 = vmatpush1.msra.mxu0 0.0
    %106 = vmatprep.subr.mxu0 0.0
    %107 = vmatpush1.msra.mxu0 0.0
    %108 = vmatprep.mubr.f32.mxu0 0.0
    %109 = vmatmul.mubr.f32.gmra.mrb[0].mxu0 %v26
    %v110 = vpop.f32.mrb[0].mxu0
    %v111 = vadd.f32 0.0, %v110
    %v112 = vpop.f32.mrb[0].mxu0
    %113 = vmatprep.mubr.f32.mxu0 0.0
    %114 = vmatmul.mubr.f32.gmra.mrb[0].mxu0 %v27
    %v115 = vpop.f32.mrb[0].mxu0
    %v116 = vadd.f32 0.0, %v115
    %v117 = vpop.f32.mrb[0].mxu0
    %118 = vdwg.mxu0
    %v119 = vmul.f32 %v111, 11.313708
    %v120 = vmul.f32 %v116, 11.313708
    %121 = vst [vmem:[#allocation2] sm:$0xff] %v119
    %122 = vst [vmem:[#allocation2 + $0x8] sm:$0xff] %v120
    // Predicated region
    $region10: #{embeddings_forward.1} parent=1 // pred_check
      _
    $region11: #{embeddings_forward.1} parent=1 // pred_check_branch
      %124 = sbr.rel (0) target = $region13
    $region12: #{embeddings_forward.1} parent=1 // pred_region
      %s126 = ssub.s32 256, 256
      %127 = vsyncadd [#allocation3], %s126
      %s128 = sshll.u32 [#allocation2], 4
      %s129 = int_to_ptr.vmem [resolvable:$true] %s128
      %134 = dma.vmem_to_hbm [thread:$0]  %s129, 256, %s2, [#allocation3], 128, 128, 8
    $region13: #{embeddings_forward.1} parent=1 // pred_fallthru
      _
    // Predicated region
    $region14: #{embeddings_forward.1} parent=1 // pred_check
      _
    $region15: #{embeddings_forward.1} parent=1 // pred_check_branch
      %136 = sbr.rel (0) target = $region17
    $region16: #{embeddings_forward.1} parent=1 // pred_region
      %137 = dma.done [#allocation3], 256
    $region17: #{embeddings_forward.1} parent=1 // pred_fallthru
      _
    %138 = vsyncpa [#allocation3], 1

</llo_original>
